<compile_context>
chip_gen: v5e
topology: v5e:2x2
jax: 0.10.0
libtpu: 0.0.40
codegen_flags: <defaults>
</compile_context>

<pallas_src>
import functools

import jax
import jax.numpy as jnp
from jax import lax
from jax.experimental import pallas as pl
from jax.experimental.pallas import tpu as pltpu


_SELU_ALPHA = 1.6732632423543772848170429916717
_SELU_SCALE = 1.0507009873554804934193349852946


def _apply_nonlinearity(y, non_linearity):
    if non_linearity is None or non_linearity == "linear":
        return y
    if non_linearity == "relu":
        return jnp.maximum(y, 0.0)
    if non_linearity == "elu":
        return jnp.where(y > 0, y, jnp.expm1(y))
    if non_linearity == "selu":
        return _SELU_SCALE * jnp.where(y > 0, y, _SELU_ALPHA * jnp.expm1(y))
    if non_linearity == "tanh":
        return jnp.tanh(y)
    if non_linearity == "sigmoid":
        return jax.nn.sigmoid(y)
    raise ValueError(f"Non-linearity {non_linearity} not found.")


def dense_kernel(seed_ref, x_ref, w_ref, p_ref, o_ref, *,
                 num_k, batch_norm, non_linearity, dropout, bn_eps):
    """Grid = (n_out tiles [parallel], n_in tiles [arbitrary reduction]).

    x_ref: (B, tk)   activation tile (K on lanes)
    w_ref: (tn, tk)  weight tile, PyTorch (n_out, n_in) layout (K on lanes)
    p_ref: (3, tn)   rows: bias, bn-gamma, bn-beta
    o_ref: (B, tn)   f32 output tile; doubles as the K accumulator
    """
    # Contract dim 1 of both operands -> plain MXU matmul, no layout shuffles.
    part = lax.dot_general(
        x_ref[...], w_ref[...],
        dimension_numbers=(((1,), (1,)), ((), ())),
        preferred_element_type=jnp.float32,
    )

    def epilogue(y):
        p = p_ref[...]
        if batch_norm:
            # Linear bias is cancelled exactly by the BN mean subtraction.
            mean = jnp.mean(y, axis=0, keepdims=True)
            var = jnp.mean((y - mean) ** 2, axis=0, keepdims=True)
            y = (y - mean) * lax.rsqrt(var + bn_eps)
            y = y * p[1:2, :] + p[2:3, :]
        else:
            y = y + p[0:1, :]
        y = _apply_nonlinearity(y, non_linearity)
        if dropout > 0.0:
            # Fused inverted dropout; per-output-tile seed offset.
            pltpu.prng_seed(seed_ref[0] + pl.program_id(0))
            bits = pltpu.bitcast(pltpu.prng_random_bits(y.shape), jnp.uint32)
            u = (bits >> 9).astype(jnp.float32) * (1.0 / (1 << 23))
            keep = u >= jnp.float32(dropout)
            y = jnp.where(keep, y * (1.0 / (1.0 - dropout)), 0.0)
        return y.astype(o_ref.dtype)

    if num_k == 1:
        # Single K step (shipped config): no accumulator phases, one store.
        o_ref[...] = epilogue(part)
    else:
        k = pl.program_id(1)

        @pl.when(k == 0)
        def _():
            o_ref[...] = part

        @pl.when(jnp.logical_and(k > 0, k < num_k - 1))
        def _():
            o_ref[...] = o_ref[...] + part

        @pl.when(k == num_k - 1)
        def _():
            o_ref[...] = epilogue(o_ref[...] + part)


def _pick_tile(dim, candidates=(512, 256, 128)):
    """Full dim if small; else largest candidate that divides; else full dim."""
    if dim <= candidates[0]:
        return dim
    for c in candidates:
        if dim % c == 0:
            return c
    return dim


def dense_forward(x, weight, bias, gamma=None, beta=None, *,
                  non_linearity=None, batch_norm=False, dropout=0.0,
                  bn_eps=1e-5, dropout_seed=0):
    """x: (B, n_in) f32. weight: (n_out, n_in) (PyTorch layout). bias: (n_out,)."""
    # TODO(synk): weight_norm variant of the module is not implemented here.
    B, n_in = x.shape
    n_out, n_in_w = weight.shape
    assert n_in_w == n_in

    if gamma is None:
        gamma = jnp.ones((n_out,), jnp.float32)
    if beta is None:
        beta = jnp.zeros((n_out,), jnp.float32)

    # Pack bias / gamma / beta into a single (3, n_out) input.
    params = jnp.stack([bias.astype(jnp.float32),
                        gamma.astype(jnp.float32),
                        beta.astype(jnp.float32)], axis=0)

    tn = _pick_tile(n_out)
    tk = _pick_tile(n_in)

    # Conservative VMEM budget (v7x-safe): 2x double-buffered x + W tiles,
    # double-buffered params, resident output.  Shrink tn first, then tk.
    def vmem_bytes(tn_, tk_):
        return 4 * (2 * B * tk_ + 2 * tn_ * tk_ + 2 * 3 * tn_ + 2 * B * tn_)

    budget = 20 * 1024 * 1024
    for cand in (256, 128):
        if vmem_bytes(tn, tk) <= budget:
            break
        if cand < tn and n_out % cand == 0:
            tn = cand
    for cand in (256, 128):
        if vmem_bytes(tn, tk) <= budget:
            break
        if cand < tk and n_in % cand == 0:
            tk = cand

    num_n = n_out // tn
    num_k = n_in // tk

    kern = functools.partial(
        dense_kernel,
        num_k=num_k,
        batch_norm=batch_norm,
        non_linearity=non_linearity,
        dropout=float(dropout),
        bn_eps=bn_eps,
    )

    seed = jnp.asarray([dropout_seed], dtype=jnp.int32)

    return pl.pallas_call(
        kern,
        out_shape=jax.ShapeDtypeStruct((B, n_out), jnp.float32),
        grid_spec=pltpu.PrefetchScalarGridSpec(
            num_scalar_prefetch=1,                     # dropout seed (SMEM)
            grid=(num_n, num_k),
            in_specs=[
                pl.BlockSpec((B, tk), lambda n, k, s: (0, k)),    # x
                pl.BlockSpec((tn, tk), lambda n, k, s: (n, k)),   # W (n_out,n_in)
                pl.BlockSpec((3, tn), lambda n, k, s: (0, n)),    # bias/gamma/beta
            ],
            out_specs=pl.BlockSpec((B, tn), lambda n, k, s: (0, n)),
        ),
        compiler_params=pltpu.CompilerParams(
            dimension_semantics=("parallel", "arbitrary"),
        ),
    )(seed, x, weight, params)


def glorot_uniform(key, n_out, n_in, gain=1.0):
    bound = gain * jnp.sqrt(6.0 / (n_in + n_out))
    return jax.random.uniform(key, (n_out, n_in), jnp.float32, -bound, bound)


def reference_forward(x, weight, bias, gamma, beta, *,
                      non_linearity, batch_norm, bn_eps=1e-5):
    y = x @ weight.T + bias
    if batch_norm:
        mean = jnp.mean(y, axis=0, keepdims=True)
        var = jnp.mean((y - mean) ** 2, axis=0, keepdims=True)
        y = (y - mean) * lax.rsqrt(var + bn_eps) * gamma + beta
    return _apply_nonlinearity(y, non_linearity)


if __name__ == "__main__":
    # Dense(n_in=256, n_out=128, non_linearity='relu', batch_norm=True,
    #       dropout=0.0, initialize='glorot_uniform')
    B, n_in, n_out = 8, 256, 128
    non_linearity = "relu"
    batch_norm = True

    key = jax.random.PRNGKey(0)
    kx, kw, kg = jax.random.split(key, 3)

    x = jax.random.normal(kx, (B, n_in), jnp.float32)

    relu_gain = jnp.sqrt(2.0)  # init.calculate_gain('relu')
    weight = glorot_uniform(kw, n_out, n_in, gain=relu_gain)
    bias = jnp.zeros((n_out,), jnp.float32)            # init.constant(bias, 0.0)
    gamma = 1.0 + 0.02 * jax.random.normal(kg, (n_out,), jnp.float32)  # N(1, .02)
    beta = jnp.zeros((n_out,), jnp.float32)

    out = dense_forward(
        x, weight, bias, gamma, beta,
        non_linearity=non_linearity, batch_norm=batch_norm, dropout=0.0,
    )
    out = jax.block_until_ready(out)

    ref = reference_forward(
        x, weight, bias, gamma, beta,
        non_linearity=non_linearity, batch_norm=batch_norm,
    )

    assert out.shape == (B, n_out)
    assert jnp.allclose(out, ref, atol=1e-4, rtol=1e-4), \
        float(jnp.max(jnp.abs(out - ref)))
    print("KERNEL_OK")
</pallas_src>

<mosaic_0001>
module attributes {stable_mosaic.version = 11 : i64} {
  func.func @dense_kernel(%arg0: i32, %arg1: i32, %arg2: memref<1xi32, #tpu.memory_space<smem>>, %arg3: memref<8x256xf32, #tpu.memory_space<vmem>>, %arg4: memref<128x256xf32, #tpu.memory_space<vmem>>, %arg5: memref<3x128xf32, #tpu.memory_space<vmem>>, %arg6: memref<8x128xf32, #tpu.memory_space<vmem>>) attributes {dimension_semantics = [#tpu.dimension_semantics<parallel>, #tpu.dimension_semantics<arbitrary>], iteration_bounds = array<i64: 1, 1>, scalar_prefetch = 1 : i64, scratch_operands = 0 : i64, tpu.core_type = #tpu.core_type<tc>, window_params = [{transform_indices = @transform_0, window_bounds = array<i64: 8, 256>}, {transform_indices = @transform_1, window_bounds = array<i64: 128, 256>}, {transform_indices = @transform_2, window_bounds = array<i64: 3, 128>}, {transform_indices = @transform_3, window_bounds = array<i64: 8, 128>}]} {
    %c0 = arith.constant 0 : index
    %c0_0 = arith.constant 0 : index
    %0 = vector.load %arg3[%c0, %c0_0] : memref<8x256xf32, #tpu.memory_space<vmem>>, vector<8x256xf32>
    %c0_1 = arith.constant 0 : index
    %c0_2 = arith.constant 0 : index
    %1 = vector.load %arg4[%c0_1, %c0_2] : memref<128x256xf32, #tpu.memory_space<vmem>>, vector<128x256xf32>
    %cst = arith.constant dense<0.000000e+00> : vector<8x128xf32>
    %2 = tpu.matmul %0, %1, %cst {dimension_numbers = #tpu.dot_dimension_numbers<[1], [1], [0], [0], [0, 0, 1, 0], [], []>} : vector<8x256xf32>, vector<128x256xf32>, vector<8x128xf32> -> vector<8x128xf32>
    %c0_3 = arith.constant 0 : index
    %c0_4 = arith.constant 0 : index
    %3 = vector.load %arg5[%c0_3, %c0_4] : memref<3x128xf32, #tpu.memory_space<vmem>>, vector<3x128xf32>
    %cst_5 = arith.constant dense<0.000000e+00> : vector<128xf32>
    %4 = vector.multi_reduction <add>, %2, %cst_5 [0] : vector<8x128xf32> to vector<128xf32>
    %5 = vector.shape_cast %4 : vector<128xf32> to vector<1x128xf32>
    %cst_6 = arith.constant 8.000000e+00 : f32
    %6 = vector.broadcast %cst_6 : f32 to vector<1x128xf32>
    %7 = arith.divf %5, %6 : vector<1x128xf32>
    %8 = vector.broadcast %7 : vector<1x128xf32> to vector<8x128xf32>
    %9 = arith.subf %2, %8 : vector<8x128xf32>
    %10 = arith.mulf %9, %9 : vector<8x128xf32>
    %cst_7 = arith.constant dense<0.000000e+00> : vector<128xf32>
    %11 = vector.multi_reduction <add>, %10, %cst_7 [0] : vector<8x128xf32> to vector<128xf32>
    %12 = vector.shape_cast %11 : vector<128xf32> to vector<1x128xf32>
    %cst_8 = arith.constant 8.000000e+00 : f32
    %13 = vector.broadcast %cst_8 : f32 to vector<1x128xf32>
    %14 = arith.divf %12, %13 : vector<1x128xf32>
    %15 = vector.broadcast %7 : vector<1x128xf32> to vector<8x128xf32>
    %16 = arith.subf %2, %15 : vector<8x128xf32>
    %cst_9 = arith.constant 9.99999974E-6 : f32
    %17 = vector.broadcast %cst_9 : f32 to vector<1x128xf32>
    %18 = arith.addf %14, %17 : vector<1x128xf32>
    %19 = math.rsqrt %18 : vector<1x128xf32>
    %20 = vector.broadcast %19 : vector<1x128xf32> to vector<8x128xf32>
    %21 = arith.mulf %16, %20 : vector<8x128xf32>
    %22 = vector.extract_strided_slice %3 {offsets = [1, 0], sizes = [1, 128], strides = [1, 1]} : vector<3x128xf32> to vector<1x128xf32>
    %23 = vector.broadcast %22 : vector<1x128xf32> to vector<8x128xf32>
    %24 = arith.mulf %21, %23 : vector<8x128xf32>
    %25 = vector.extract_strided_slice %3 {offsets = [2, 0], sizes = [1, 128], strides = [1, 1]} : vector<3x128xf32> to vector<1x128xf32>
    %26 = vector.broadcast %25 : vector<1x128xf32> to vector<8x128xf32>
    %27 = arith.addf %24, %26 : vector<8x128xf32>
    %cst_10 = arith.constant 0.000000e+00 : f32
    %28 = vector.broadcast %cst_10 : f32 to vector<8x128xf32>
    %29 = arith.maximumf %27, %28 : vector<8x128xf32>
    %c0_11 = arith.constant 0 : index
    %c0_12 = arith.constant 0 : index
    %30 = vector.load %arg6[%c0_11, %c0_12] : memref<8x128xf32, #tpu.memory_space<vmem>>, vector<8x128xf32>
    tpu.vector_store %arg6[%c0_11, %c0_12], %29 {strides = array<i32>} : memref<8x128xf32, #tpu.memory_space<vmem>>, vector<8x128xf32>,
    return
  }
  func.func @transform_0(%arg0: i32, %arg1: i32, %arg2: memref<1xi32, #tpu.memory_space<smem>>) -> (i32, i32) {
    %c0_i32 = arith.constant 0 : i32
    %c0_i32_0 = arith.constant 0 : i32
    return %c0_i32, %arg1 : i32, i32
  }
  func.func @transform_1(%arg0: i32, %arg1: i32, %arg2: memref<1xi32, #tpu.memory_space<smem>>) -> (i32, i32) {
    %c0_i32 = arith.constant 0 : i32
    return %arg0, %arg1 : i32, i32
  }
  func.func @transform_2(%arg0: i32, %arg1: i32, %arg2: memref<1xi32, #tpu.memory_space<smem>>) -> (i32, i32) {
    %c0_i32 = arith.constant 0 : i32
    %c0_i32_0 = arith.constant 0 : i32
    return %c0_i32, %arg0 : i32, i32
  }
  func.func @transform_3(%arg0: i32, %arg1: i32, %arg2: memref<1xi32, #tpu.memory_space<smem>>) -> (i32, i32) {
    %c0_i32 = arith.constant 0 : i32
    %c0_i32_0 = arith.constant 0 : i32
    return %c0_i32, %arg0 : i32, i32
  }
}

</mosaic_0001>

<llo_original>
// kernel: tpu_custom_call.1
$region0: #{tpu_custom_call.1}
  #allocation0 [shape = 'u32[]', space=smem, size = 0x4, offset = 0x4, fixed_abs, tag = 'smem constant byte address 0x4 - core index']
  #allocation1 [shape = 'u32[72,128]{1,0:T(1,128)}', space=vmem, size = 0x9000, scoped, tag = 'internal scratch']
  #allocation2 [shape = 's32[1]{0}', space=sflag, size = 0x4, scoped, tag = 'scoped memory for tpu_custom_call.1']
  #allocation3 [shape = 's32[1]{0:T(128)S(6)}', space=smem, size = 0x200, scoped, tag = 'prefetched SMEM operand 0']
  %s0 = inlined_call_operand.<no memory space> [shape: s32[1], index: 0, kind: input, shape index: {}]
  %s1 = inlined_call_operand.hbm [shape: f32[8,256], index: 1, kind: input, shape index: {}]
  %s2 = inlined_call_operand.hbm [shape: f32[128,256], index: 2, kind: input, shape index: {}]
  %s3 = inlined_call_operand.hbm [shape: f32[3,128], index: 3, kind: input, shape index: {}]
  %s4 = inlined_call_operand.hbm [shape: f32[8,128], index: 4, kind: output, shape index: {}]
  %s5 = sld [smem:[#allocation0]]
  $region34: #{tpu_custom_call.1} parent=0
    _
  %s7 = ssub.s32 1, %s5
  %s8 = scalar_select 0, %s7, %s5
  %9 = sst [smem:[#allocation3]] %s0
  $region1: #{tpu_custom_call.1} parent=0
    #allocation4 [shape = 'u8[8192]{0}', space=vmem, size = 0x2000, scoped, tag = 'input window, operand 1, single buffered']
    #allocation5 [shape = 's32[1]{0}', space=sflag, size = 0x4, scoped, tag = 'scoped memory for tpu_custom_call.1']
    #allocation6 [shape = 's32[1]{0}', space=sflag, size = 0x4, scoped, tag = 'scoped memory for tpu_custom_call.1']
    #allocation7 [shape = 'u8[131072]{0}', space=vmem, size = 0x20000, scoped, tag = 'input window, operand 2, single buffered']
    #allocation8 [shape = 's32[1]{0}', space=sflag, size = 0x4, scoped, tag = 'scoped memory for tpu_custom_call.1']
    #allocation9 [shape = 'u8[2048]{0}', space=vmem, size = 0x800, scoped, tag = 'input window, operand 3, single buffered']
    #allocation10 [shape = 'u8[4096]{0}', space=vmem, size = 0x1000, scoped, tag = 'output window, operand 0, single buffered']
    %10 = vsyncpa [#allocation5], 0
    %11 = vsyncpa [#allocation8], 0
    %12 = vsyncpa [#allocation6], 0
    // Predicated region
    $region2: #{tpu_custom_call.1} parent=1 // pred_check
      _
    $region3: #{tpu_custom_call.1} parent=1 // pred_check_branch
      %14 = sbr.rel (0) target = $region5
    $region4: #{tpu_custom_call.1} parent=1 // pred_region
      %16 = vsyncadd [#allocation5], 0
      %s18 = sshll.u32 %s1, 4
      %s19 = int_to_ptr.hbm [resolvable:$true] %s18
      %s20 = sshll.u32 [#allocation4], 4
      %s21 = int_to_ptr.vmem [resolvable:$true] %s20
      %23 = dma.hbm_to_vmem [thread:$0]  %s19, 256, %s21, [#allocation5]
    $region5: #{tpu_custom_call.1} parent=1 // pred_fallthru
      _
    // Predicated region
    $region6: #{tpu_custom_call.1} parent=1 // pred_check
      _
    $region7: #{tpu_custom_call.1} parent=1 // pred_check_branch
      %25 = sbr.rel (0) target = $region9
    $region8: #{tpu_custom_call.1} parent=1 // pred_region
      %27 = vsyncadd [#allocation8], 0
      %s28 = sshll.u32 %s2, 4
      %s29 = int_to_ptr.hbm [resolvable:$true] %s28
      %s30 = sshll.u32 [#allocation7], 4
      %s31 = int_to_ptr.vmem [resolvable:$true] %s30
      %36 = dma.hbm_to_vmem [thread:$0]  %s29, 4096, %s31, [#allocation8], 256, 256, 16
    $region9: #{tpu_custom_call.1} parent=1 // pred_fallthru
      _
    // Predicated region
    $region10: #{tpu_custom_call.1} parent=1 // pred_check
      _
    $region11: #{tpu_custom_call.1} parent=1 // pred_check_branch
      %38 = sbr.rel (0) target = $region13
    $region12: #{tpu_custom_call.1} parent=1 // pred_region
      %40 = vsyncadd [#allocation8], 0
      %s42 = sshll.u32 %s3, 4
      %s43 = int_to_ptr.hbm [resolvable:$true] %s42
      %s44 = sshll.u32 [#allocation9], 4
      %s45 = int_to_ptr.vmem [resolvable:$true] %s44
      %47 = dma.hbm_to_vmem [thread:$0]  %s43, 64, %s45, [#allocation8]
    $region13: #{tpu_custom_call.1} parent=1 // pred_fallthru
      _
    // Predicated region
    $region14: #{tpu_custom_call.1} parent=1 // pred_check
      _
    $region15: #{tpu_custom_call.1} parent=1 // pred_check_branch
      %49 = sbr.rel (0) target = $region17
    $region16: #{tpu_custom_call.1} parent=1 // pred_region
      %51 = dma.done [#allocation5], 256
    $region17: #{tpu_custom_call.1} parent=1 // pred_fallthru
      _
    // Predicated region
    $region18: #{tpu_custom_call.1} parent=1 // pred_check
      _
    $region19: #{tpu_custom_call.1} parent=1 // pred_check_branch
      %53 = sbr.rel (0) target = $region21
    $region20: #{tpu_custom_call.1} parent=1 // pred_region
      %55 = dma.done [#allocation8], 4096
    $region21: #{tpu_custom_call.1} parent=1 // pred_fallthru
      _
    // Predicated region
    $region22: #{tpu_custom_call.1} parent=1 // pred_check
      _
    $region23: #{tpu_custom_call.1} parent=1 // pred_check_branch
      %57 = sbr.rel (0) target = $region25
    $region24: #{tpu_custom_call.1} parent=1 // pred_region
      %59 = dma.done [#allocation8], 64
    $region25: #{tpu_custom_call.1} parent=1 // pred_fallthru
      _
    %v60 = vld [vmem:[#allocation4] sm:$0xff]
    %v61 = vld [vmem:[#allocation4 + $0x8] sm:$0xff]
    %v62 = vld [vmem:[#allocation7] sm:$0xff]
    %v63 = vld [vmem:[#allocation7 + $0x8] sm:$0xff]
    %v64 = vld [vmem:[#allocation7 + $0x10] sm:$0xff]
    %v65 = vld [vmem:[#allocation7 + $0x18] sm:$0xff]
    %v66 = vld [vmem:[#allocation7 + $0x20] sm:$0xff]
    %v67 = vld [vmem:[#allocation7 + $0x28] sm:$0xff]
    %v68 = vld [vmem:[#allocation7 + $0x30] sm:$0xff]
    %v69 = vld [vmem:[#allocation7 + $0x38] sm:$0xff]
    %v70 = vld [vmem:[#allocation7 + $0x40] sm:$0xff]
    %v71 = vld [vmem:[#allocation7 + $0x48] sm:$0xff]
    %v72 = vld [vmem:[#allocation7 + $0x50] sm:$0xff]
    %v73 = vld [vmem:[#allocation7 + $0x58] sm:$0xff]
    %v74 = vld [vmem:[#allocation7 + $0x60] sm:$0xff]
    %v75 = vld [vmem:[#allocation7 + $0x68] sm:$0xff]
    %v76 = vld [vmem:[#allocation7 + $0x70] sm:$0xff]
    %v77 = vld [vmem:[#allocation7 + $0x78] sm:$0xff]
    %v78 = vld [vmem:[#allocation7 + $0x80] sm:$0xff]
    %v79 = vld [vmem:[#allocation7 + $0x88] sm:$0xff]
    %v80 = vld [vmem:[#allocation7 + $0x90] sm:$0xff]
    %v81 = vld [vmem:[#allocation7 + $0x98] sm:$0xff]
    %v82 = vld [vmem:[#allocation7 + $0xa0] sm:$0xff]
    %v83 = vld [vmem:[#allocation7 + $0xa8] sm:$0xff]
    %v84 = vld [vmem:[#allocation7 + $0xb0] sm:$0xff]
    %v85 = vld [vmem:[#allocation7 + $0xb8] sm:$0xff]
    %v86 = vld [vmem:[#allocation7 + $0xc0] sm:$0xff]
    %v87 = vld [vmem:[#allocation7 + $0xc8] sm:$0xff]
    %v88 = vld [vmem:[#allocation7 + $0xd0] sm:$0xff]
    %v89 = vld [vmem:[#allocation7 + $0xd8] sm:$0xff]
    %v90 = vld [vmem:[#allocation7 + $0xe0] sm:$0xff]
    %v91 = vld [vmem:[#allocation7 + $0xe8] sm:$0xff]
    %v92 = vld [vmem:[#allocation7 + $0xf0] sm:$0xff]
    %v93 = vld [vmem:[#allocation7 + $0xf8] sm:$0xff]
    %94 = vmatpush.xpose.msra.mxu0 %v92
    %95 = vmatpush.xpose.msra.mxu0 %v90
    %96 = vmatpush.xpose.msra.mxu0 %v88
    %97 = vmatpush.xpose.msra.mxu0 %v86
    %98 = vmatpush.xpose.msra.mxu0 %v84
    %99 = vmatpush.xpose.msra.mxu0 %v82
    %100 = vmatpush.xpose.msra.mxu0 %v80
    %101 = vmatpush.xpose.msra.mxu0 %v78
    %102 = vmatpush.xpose.msra.mxu0 %v76
    %103 = vmatpush.xpose.msra.mxu0 %v74
    %104 = vmatpush.xpose.msra.mxu0 %v72
    %105 = vmatpush.xpose.msra.mxu0 %v70
    %106 = vmatpush.xpose.msra.mxu0 %v68
    %107 = vmatpush.xpose.msra.mxu0 %v66
    %108 = vmatpush.xpose.msra.mxu0 %v64
    %109 = vmatpush.xpose.msra.mxu0 %v62
    %110 = vmatmul.f32.gmra.mxu0 %v60
    %v111 = vpop.f32.mrf.mxu0
    %v112 = vadd.f32 0.0, %v111
    %113 = vdwg.mxu0
    %114 = vmatpush.xpose.msra.mxu0 %v93
    %115 = vmatpush.xpose.msra.mxu0 %v91
    %116 = vmatpush.xpose.msra.mxu0 %v89
    %117 = vmatpush.xpose.msra.mxu0 %v87
    %118 = vmatpush.xpose.msra.mxu0 %v85
    %119 = vmatpush.xpose.msra.mxu0 %v83
    %120 = vmatpush.xpose.msra.mxu0 %v81
    %121 = vmatpush.xpose.msra.mxu0 %v79
    %122 = vmatpush.xpose.msra.mxu0 %v77
    %123 = vmatpush.xpose.msra.mxu0 %v75
    %124 = vmatpush.xpose.msra.mxu0 %v73
    %125 = vmatpush.xpose.msra.mxu0 %v71
    %126 = vmatpush.xpose.msra.mxu0 %v69
    %127 = vmatpush.xpose.msra.mxu0 %v67
    %128 = vmatpush.xpose.msra.mxu0 %v65
    %129 = vmatpush.xpose.msra.mxu0 %v63
    %130 = vmatmul.f32.gmra.mxu0 %v61
    %v131 = vpop.f32.mrf.mxu0
    %v132 = vadd.f32 %v112, %v131
    %133 = vdwg.mxu0
    %v134 = vld [vmem:[#allocation9] sm:$0x7]
    %v135 = vrot.slane %v132, 4
    %v136 = vadd.f32 %v132, %v135
    %v137 = vrot.slane %v136, 2
    %v138 = vadd.f32 %v136, %v137
    %v139 = vrot.slane %v138, 1
    %v140 = vadd.f32 %v138, %v139
    %v141 = vrcp.pop 8.0
    %v142 = vmul.f32 8.0, %v141
    %v143 = vsub.f32 1.0, %v142
    %v144 = vmul.f32 %v141, %v143
    %v145 = vadd.f32 %v141, %v144
    %vm146 = vweird.f32 %v141
    %v147 = vsel %vm146, %v141, %v145
    %v148 = vmul.f32 %v140, %v147
    %v149 = vsub.f32 %v132, %v148
    %v150 = vmul.f32 %v149, %v149
    %v151 = vrot.slane %v150, 4
    %v152 = vadd.f32 %v150, %v151
    %v153 = vrot.slane %v152, 2
    %v154 = vadd.f32 %v152, %v153
    %v155 = vrot.slane %v154, 1
    %v156 = vadd.f32 %v154, %v155
    %v157 = vmul.f32 %v156, %v147
    %v158 = vadd.f32 %v157, 1e-05
    %v159 = vrsqrt.pop %v158
    %v160 = vmul.f32 %v159, %v158
    %v161 = vmul.f32 %v160, %v159
    %v162 = vmul.f32 0.5, %v161
    %v163 = vsub.f32 1.5, %v162
    %v164 = vmul.f32 %v159, %v163
    %vm165 = vweird.f32 %v158
    %vm166 = vweird.f32 %v159
    %vm167 = vmor %vm165, %vm166
    %v168 = vsel %vm167, %v159, %v164
    %v169 = vmul.f32 %v149, %v168
    %v170 = vperm.slane %v134, 1
    %v171 = vmul.f32 %v169, %v170
    %v172 = vperm.slane %v134, 2
    %v173 = vadd.f32 %v171, %v172
    %v174 = vmax.f32 %v173, 0.0
    %175 = vst [vmem:[#allocation10] sm:$0xff] %v174
    // Predicated region
    $region26: #{tpu_custom_call.1} parent=1 // pred_check
      _
    $region27: #{tpu_custom_call.1} parent=1 // pred_check_branch
      %177 = sbr.rel (0) target = $region29
    $region28: #{tpu_custom_call.1} parent=1 // pred_region
      %179 = vsyncadd [#allocation6], 0
      %s181 = sshll.u32 [#allocation10], 4
      %s182 = int_to_ptr.vmem [resolvable:$true] %s181
      %s183 = sshll.u32 %s4, 4
      %s184 = int_to_ptr.hbm [resolvable:$true] %s183
      %186 = dma.vmem_to_hbm [thread:$0]  %s182, 128, %s184, [#allocation6]
    $region29: #{tpu_custom_call.1} parent=1 // pred_fallthru
      _
    // Predicated region
    $region30: #{tpu_custom_call.1} parent=1 // pred_check
      _
    $region31: #{tpu_custom_call.1} parent=1 // pred_check_branch
      %188 = sbr.rel (0) target = $region33
    $region32: #{tpu_custom_call.1} parent=1 // pred_region
      %190 = dma.done [#allocation6], 128
    $region33: #{tpu_custom_call.1} parent=1 // pred_fallthru
      _
    %191 = vsyncpa [#allocation5], 1
    %192 = vsyncpa [#allocation8], 1
    %193 = vsyncpa [#allocation6], 1

</llo_original>
